<compile_context>
chip_gen: v7x
topology: tpu7x:2x2x1
jax: 0.10.0
libtpu: 0.0.40
codegen_flags: <defaults>
</compile_context>

<pallas_src>
import jax
import jax.numpy as jnp
from jax.experimental import pallas as pl
from jax.experimental.pallas import tpu as pltpu


# --------------------------------------------------------------------------- #
# Kernels
# --------------------------------------------------------------------------- #
def _conv_max_kernel(x_ref,                      # (tb, C_in, tn)  NCW tile
                     w1_ref, b1_ref,             # (dim, C_in) bf16, (dim, 1) f32
                     w2_ref, b2_ref,             # (dim, dim)  bf16, (dim, 1) f32
                     o_ref,                      # (tb, dim, 1)  pooled output
                     acc_ref):                   # (tb, dim, 1)  running max (f32)
    n_idx = pl.program_id(1)
    tb = x_ref.shape[0]

    # Init the running-max accumulator at the first points tile of this batch tile.
    @pl.when(n_idx == 0)
    def _init():
        acc_ref[...] = jnp.full(acc_ref.shape, -jnp.inf, acc_ref.dtype)

    w1 = w1_ref[...]                             # bf16 (dim, C_in)
    w2 = w2_ref[...]                             # bf16 (dim, dim)
    b1 = b1_ref[...]                             # f32  (dim, 1)
    b2 = b2_ref[...]                             # f32  (dim, 1)

    # Channels-first compute: points stay on lanes, no transposes anywhere.
    for b in range(tb):                          # static unroll; tb kept small
        xb = x_ref[b].astype(jnp.bfloat16)       # (C_in, tn)
        # conv1: Conv1d(C_in, dim, 1)
        h = jnp.dot(w1, xb, preferred_element_type=jnp.float32) + b1   # (dim, tn)
        h = jnp.maximum(h, 0.0).astype(jnp.bfloat16)
        # conv2: Conv1d(dim, dim, 1)
        h = jnp.dot(w2, h, preferred_element_type=jnp.float32) + b2    # (dim, tn)
        # partial max over this points tile (lane-axis reduce), fold into running max
        m = jnp.max(h, axis=-1, keepdims=True)                         # (dim, 1)
        acc_ref[b] = jnp.maximum(acc_ref[b], m)

    @pl.when(n_idx == pl.num_programs(1) - 1)
    def _finalize():
        o_ref[...] = acc_ref[...]


def _mlp_head_kernel(s_ref,                      # (B, dim) pooled features
                     w3_ref, b3_ref, w4_ref, b4_ref,      # lin
                     w5_ref, b5_ref, w6_ref, b6_ref,      # classifier (padded)
                     o_ref):                     # (B, n_cls_padded)
    s = s_ref[...]
    # lin: Linear(dim, dim) -> ReLU -> Linear(dim, out_ch)
    y = jnp.dot(s, w3_ref[...], preferred_element_type=jnp.float32) + b3_ref[...]
    y = jnp.maximum(y, 0.0)
    y = jnp.dot(y, w4_ref[...], preferred_element_type=jnp.float32) + b4_ref[...]
    # classifier: Linear(out_ch, out_ch) -> ReLU -> Linear(out_ch, 10 [padded to 128])
    y = jnp.maximum(
        jnp.dot(y, w5_ref[...], preferred_element_type=jnp.float32) + b5_ref[...], 0.0)
    y = jnp.dot(y, w6_ref[...], preferred_element_type=jnp.float32) + b6_ref[...]
    o_ref[...] = y


# --------------------------------------------------------------------------- #
# Tile / VMEM heuristics
# --------------------------------------------------------------------------- #
def _vmem_capacity_bytes():
    try:
        return int(getattr(pltpu.get_tpu_info(), "vmem_capacity_bytes",
                           64 * 1024 * 1024))
    except Exception:                 # best-effort HW query; assume smallest (v7x) part
        return 64 * 1024 * 1024


def _pick_batch_tile(batch, n, dim, two_cores):
    """Batch rows processed per grid step."""
    if batch <= 1 or n * dim >= (1 << 18):
        # Each batch row already gives multi-us of work per step -> no batch tiling.
        tb = 1
    else:
        tb = min(8, batch)
        while batch % tb:
            tb -= 1
    if two_cores:
        # v7x shards the "parallel" batch axis over 2 TensorCores: keep an even
        # number of batch grid steps so the cores stay balanced.
        while tb > 1 and (batch // tb) % 2 != 0:
            tb -= 1
            while batch % tb:
                tb -= 1
    return tb


def _pick_point_tile(n, dim, tb, budget_bytes):
    """Largest points tile whose per-step working set fits the VMEM budget."""
    # per point per batch row: 2 x double-buffers (8 sublanes * 4B) +
    # ~2.5 live (dim, tn) f32/bf16 intermediates (~10*dim bytes).
    per_point = max(1, tb) * (64 + 10 * dim)
    cap = max(128, budget_bytes // per_point)
    if n <= cap:
        return n                                  # full axis (block == full dim is legal)
    t = (cap // 128) * 128
    while t >= 128:
        if n % t == 0:                            # lane axis must be 128-multiple or full
            return t
        t -= 128
    # TODO(synk): mask ragged point tails instead of falling back to the full axis.
    return n


# --------------------------------------------------------------------------- #
# Wrapper
# --------------------------------------------------------------------------- #
def max_encoder_forward(x_ncw, params, n_points=None):
    """x_ncw: (B, C_in, N) float32/bfloat16 (native PyTorch NCW). Returns (B, 10).

    n_points is accepted for signature parity with the PyTorch module, which
    ignores it in forward().
    """
    del n_points
    (w1, b1, w2, b2, w3, b3, w4, b4, w5, b5, w6, b6) = params

    B, C_in, N = x_ncw.shape
    dim = w1.shape[1]
    out_ch = w4.shape[1]
    n_cls = w6.shape[1]

    # Per-generation VMEM budgeting: v7x has a 64 MiB part, v5e/v6e have 128 MiB.
    vmem_cap = _vmem_capacity_bytes()
    vmem_limit = int(min(vmem_cap * 3 // 4, 96 * 1024 * 1024))
    two_cores = vmem_cap <= 80 * 1024 * 1024       # 64 MiB VMEM => v7x (2 TCs/chip)

    tb = _pick_batch_tile(B, N, dim, two_cores)
    tn = _pick_point_tile(N, dim, tb, vmem_limit // 2)
    nb, nn = B // tb, pl.cdiv(N, tn)               # tn divides N by construction

    # Conv weights pre-transposed to (out, in) and cast to bf16 (MXU-native);
    # biases shaped (dim, 1) so they broadcast over the lane (points) axis.
    w1t = jnp.asarray(w1, jnp.float32).T.astype(jnp.bfloat16)      # (dim, C_in)
    w2t = jnp.asarray(w2, jnp.float32).T.astype(jnp.bfloat16)      # (dim, dim)
    b1c = jnp.asarray(b1, jnp.float32).reshape(dim, 1)
    b2c = jnp.asarray(b2, jnp.float32).reshape(dim, 1)

    def _const(shape):
        return pl.BlockSpec(shape, lambda b, n, _s=len(shape): (0,) * _s)

    pooled = pl.pallas_call(
        _conv_max_kernel,
        out_shape=jax.ShapeDtypeStruct((B, dim, 1), jnp.float32),
        grid_spec=pltpu.PrefetchScalarGridSpec(
            num_scalar_prefetch=0,
            grid=(nb, nn),                          # points (reduction) axis last
            in_specs=[
                pl.BlockSpec((tb, C_in, tn), lambda b, n: (b, 0, n)),   # native NCW
                _const(w1t.shape), _const(b1c.shape),
                _const(w2t.shape), _const(b2c.shape),
            ],
            out_specs=pl.BlockSpec((tb, dim, 1), lambda b, n: (b, 0, 0)),
            scratch_shapes=[pltpu.VMEM((tb, dim, 1), jnp.float32)],
        ),
        compiler_params=pltpu.CompilerParams(
            dimension_semantics=("parallel", "arbitrary"),
            vmem_limit_bytes=vmem_limit,
        ),
    )(x_ncw, w1t, b1c, w2t, b2c)

    # ---- tail MLP (lin + classifier) on the tiny pooled (B, dim) activations ----
    s = jnp.reshape(pooled, (B, dim))
    b3r = jnp.asarray(b3, jnp.float32).reshape(1, -1)
    b4r = jnp.asarray(b4, jnp.float32).reshape(1, -1)
    b5r = jnp.asarray(b5, jnp.float32).reshape(1, -1)

    # Pad the classifier output to a lane-dense width; slice back below.
    ncls_pad = max(128, ((n_cls + 127) // 128) * 128)
    w6p = jnp.zeros((out_ch, ncls_pad), jnp.float32).at[:, :n_cls].set(
        jnp.asarray(w6, jnp.float32))
    b6p = jnp.zeros((1, ncls_pad), jnp.float32).at[:, :n_cls].set(
        jnp.asarray(b6, jnp.float32).reshape(1, -1))

    logits = pl.pallas_call(
        _mlp_head_kernel,
        out_shape=jax.ShapeDtypeStruct((B, ncls_pad), jnp.float32),
    )(s, jnp.asarray(w3, jnp.float32), b3r,
      jnp.asarray(w4, jnp.float32), b4r,
      jnp.asarray(w5, jnp.float32), b5r,
      w6p, b6p)

    return logits[:, :n_cls]


# --------------------------------------------------------------------------- #
# Params + references
# --------------------------------------------------------------------------- #
def init_params(key, input_channels, output_channels, dim, n_cls=10):
    """Deterministic synthetic parameters. Weights stored as (in, out), biases (out,)."""
    ks = jax.random.split(key, 12)

    def w(k, fan_in, fan_out):
        return jax.random.normal(k, (fan_in, fan_out), jnp.float32) / jnp.sqrt(fan_in)

    def b(k, fan_out):
        return 0.01 * jax.random.normal(k, (fan_out,), jnp.float32)

    w1, b1 = w(ks[0], input_channels, dim), b(ks[1], dim)        # Conv1d(C_in, dim, 1)
    w2, b2 = w(ks[2], dim, dim), b(ks[3], dim)                   # Conv1d(dim, dim, 1)
    w3, b3 = w(ks[4], dim, dim), b(ks[5], dim)                   # Linear(dim, dim)
    w4, b4 = w(ks[6], dim, output_channels), b(ks[7], output_channels)
    w5, b5 = w(ks[8], output_channels, output_channels), b(ks[9], output_channels)
    w6, b6 = w(ks[10], output_channels, n_cls), b(ks[11], n_cls)
    return (w1, b1, w2, b2, w3, b3, w4, b4, w5, b5, w6, b6)


def reference_forward(x_ncw, params, conv_dtype=jnp.float32):
    """Pure-JAX reference matching the PyTorch MaxEncoder semantics.

    conv_dtype=bfloat16 reproduces the kernel's bf16-operand / f32-accumulate
    conv path for a tight numerical comparison.
    """
    (w1, b1, w2, b2, w3, b3, w4, b4, w5, b5, w6, b6) = params
    x = jnp.transpose(x_ncw, (0, 2, 1)).astype(conv_dtype)        # (B, N, C_in)
    h = jnp.dot(x, w1.astype(conv_dtype),
                preferred_element_type=jnp.float32) + b1
    h = jnp.maximum(h, 0.0).astype(conv_dtype)
    h = jnp.dot(h, w2.astype(conv_dtype),
                preferred_element_type=jnp.float32) + b2
    s = jnp.max(h, axis=1)                                        # == x.max(2)[0]
    y = jnp.maximum(s @ w3 + b3, 0.0) @ w4 + b4
    y = jnp.maximum(y @ w5 + b5, 0.0) @ w6 + b6
    return y


# --------------------------------------------------------------------------- #
# Demo / self-check
# --------------------------------------------------------------------------- #
if __name__ == "__main__":
    key = jax.random.PRNGKey(0)
    k_x, k_p = jax.random.split(key)

    B, C_in, N = 2, 4, 16
    dim, out_ch = 32, 16

    x = jax.random.normal(k_x, (B, C_in, N), jnp.float32)        # PyTorch NCW layout
    n_points = jnp.full((B,), N, jnp.int32)                      # ignored by forward()
    params = init_params(k_p, C_in, out_ch, dim)

    out = max_encoder_forward(x, params, n_points)
    out = jax.block_until_ready(out)
    assert out.shape == (B, 10)

    # Tight check vs a reference that matches the kernel's bf16-conv / f32-acc path.
    ref_matched = reference_forward(x, params, conv_dtype=jnp.bfloat16)
    assert jnp.allclose(out, ref_matched, atol=2e-3, rtol=2e-3), \
        "mismatch vs bf16-conv reference"

    # Loose sanity check vs the full-f32 PyTorch-equivalent reference.
    ref_f32 = reference_forward(x, params, conv_dtype=jnp.float32)
    assert jnp.allclose(out, ref_f32, atol=5e-2, rtol=5e-2), \
        "mismatch vs f32 reference"

    print("KERNEL_OK")
</pallas_src>

<mosaic_0001>
module attributes {stable_mosaic.version = 11 : i64} {
  func.func @_conv_max_kernel(%arg0: i32, %arg1: i32, %arg2: memref<1x4x16xf32, #tpu.memory_space<vmem>>, %arg3: memref<32x4xbf16, #tpu.memory_space<vmem>>, %arg4: memref<32x1xf32, #tpu.memory_space<vmem>>, %arg5: memref<32x32xbf16, #tpu.memory_space<vmem>>, %arg6: memref<32x1xf32, #tpu.memory_space<vmem>>, %arg7: memref<1x32x1xf32, #tpu.memory_space<vmem>>, %arg8: memref<1x32x1xf32, #tpu.memory_space<vmem>>) attributes {dimension_semantics = [#tpu.dimension_semantics<parallel>, #tpu.dimension_semantics<arbitrary>], iteration_bounds = array<i64: 2, 1>, scalar_prefetch = 0 : i64, scratch_operands = 1 : i64, tpu.core_type = #tpu.core_type<tc>, window_params = [{transform_indices = @transform_0, window_bounds = array<i64: 1, 4, 16>}, {pipeline_mode = #tpu.pipeline_mode<synchronous>, transform_indices = @transform_1, window_bounds = array<i64: 32, 4>}, {pipeline_mode = #tpu.pipeline_mode<synchronous>, transform_indices = @transform_2, window_bounds = array<i64: 32, 1>}, {pipeline_mode = #tpu.pipeline_mode<synchronous>, transform_indices = @transform_3, window_bounds = array<i64: 32, 32>}, {pipeline_mode = #tpu.pipeline_mode<synchronous>, transform_indices = @transform_4, window_bounds = array<i64: 32, 1>}, {transform_indices = @transform_5, window_bounds = array<i64: 1, 32, 1>}]} {
    %c0_i32 = arith.constant 0 : i32
    %0 = arith.cmpi eq, %arg1, %c0_i32 : i32
    %1 = arith.extui %0 : i1 to i32
    %c0_i32_0 = arith.constant 0 : i32
    %2 = arith.cmpi ne, %1, %c0_i32_0 : i32
    scf.if %2 {
      %cst_22 = arith.constant 0xFF800000 : f32
      %30 = vector.broadcast %cst_22 : f32 to vector<1x32x1xf32>
      %c0_23 = arith.constant 0 : index
      %c0_24 = arith.constant 0 : index
      %c0_25 = arith.constant 0 : index
      %31 = vector.load %arg8[%c0_23, %c0_24, %c0_25] : memref<1x32x1xf32, #tpu.memory_space<vmem>>, vector<1x32x1xf32>
      tpu.vector_store %arg8[%c0_23, %c0_24, %c0_25], %30 {strides = array<i32>} : memref<1x32x1xf32, #tpu.memory_space<vmem>>, vector<1x32x1xf32>,
    } else {
    }
    %c0 = arith.constant 0 : index
    %c0_1 = arith.constant 0 : index
    %3 = vector.load %arg3[%c0, %c0_1] : memref<32x4xbf16, #tpu.memory_space<vmem>>, vector<32x4xbf16>
    %c0_2 = arith.constant 0 : index
    %c0_3 = arith.constant 0 : index
    %4 = vector.load %arg5[%c0_2, %c0_3] : memref<32x32xbf16, #tpu.memory_space<vmem>>, vector<32x32xbf16>
    %c0_4 = arith.constant 0 : index
    %c0_5 = arith.constant 0 : index
    %5 = vector.load %arg4[%c0_4, %c0_5] : memref<32x1xf32, #tpu.memory_space<vmem>>, vector<32x1xf32>
    %c0_6 = arith.constant 0 : index
    %c0_7 = arith.constant 0 : index
    %6 = vector.load %arg6[%c0_6, %c0_7] : memref<32x1xf32, #tpu.memory_space<vmem>>, vector<32x1xf32>
    %c0_8 = arith.constant 0 : index
    %c0_9 = arith.constant 0 : index
    %c0_10 = arith.constant 0 : index
    %7 = vector.load %arg2[%c0_8, %c0_9, %c0_10] : memref<1x4x16xf32, #tpu.memory_space<vmem>>, vector<1x4x16xf32>
    %8 = vector.shape_cast %7 : vector<1x4x16xf32> to vector<4x16xf32>
    %9 = arith.truncf %8 : vector<4x16xf32> to vector<4x16xbf16>
    %cst = arith.constant dense<0.000000e+00> : vector<32x16xf32>
    %10 = tpu.matmul %3, %9, %cst {dimension_numbers = #tpu.dot_dimension_numbers<[1], [0], [0], [1], [0, 0, 1, 1], [], []>} : vector<32x4xbf16>, vector<4x16xbf16>, vector<32x16xf32> -> vector<32x16xf32>
    %11 = vector.broadcast %5 : vector<32x1xf32> to vector<32x16xf32>
    %12 = arith.addf %10, %11 : vector<32x16xf32>
    %cst_11 = arith.constant 0.000000e+00 : f32
    %13 = vector.broadcast %cst_11 : f32 to vector<32x16xf32>
    %14 = arith.maximumf %12, %13 : vector<32x16xf32>
    %15 = arith.truncf %14 : vector<32x16xf32> to vector<32x16xbf16>
    %cst_12 = arith.constant dense<0.000000e+00> : vector<32x16xf32>
    %16 = tpu.matmul %4, %15, %cst_12 {dimension_numbers = #tpu.dot_dimension_numbers<[1], [0], [0], [1], [0, 0, 1, 1], [], []>} : vector<32x32xbf16>, vector<32x16xbf16>, vector<32x16xf32> -> vector<32x16xf32>
    %17 = vector.broadcast %6 : vector<32x1xf32> to vector<32x16xf32>
    %18 = arith.addf %16, %17 : vector<32x16xf32>
    %cst_13 = arith.constant dense<0xFF800000> : vector<32xf32>
    %19 = vector.multi_reduction <maximumf>, %18, %cst_13 [1] : vector<32x16xf32> to vector<32xf32>
    %20 = vector.shape_cast %19 : vector<32xf32> to vector<32x1xf32>
    %c0_14 = arith.constant 0 : index
    %c0_15 = arith.constant 0 : index
    %c0_16 = arith.constant 0 : index
    %21 = vector.load %arg8[%c0_14, %c0_15, %c0_16] : memref<1x32x1xf32, #tpu.memory_space<vmem>>, vector<1x32x1xf32>
    %22 = vector.shape_cast %21 : vector<1x32x1xf32> to vector<32x1xf32>
    %23 = arith.maximumf %22, %20 : vector<32x1xf32>
    %c0_17 = arith.constant 0 : index
    %c0_18 = arith.constant 0 : index
    %c0_19 = arith.constant 0 : index
    %24 = vector.load %arg8[%c0_17, %c0_18, %c0_19] : memref<1x32x1xf32, #tpu.memory_space<vmem>>, vector<1x32x1xf32>
    %25 = vector.shape_cast %24 : vector<1x32x1xf32> to vector<32x1xf32>
    %26 = vector.shape_cast %23 : vector<32x1xf32> to vector<1x32x1xf32>
    tpu.vector_store %arg8[%c0_17, %c0_18, %c0_19], %26 {strides = array<i32>} : memref<1x32x1xf32, #tpu.memory_space<vmem>>, vector<1x32x1xf32>,
    %c0_i32_20 = arith.constant 0 : i32
    %27 = arith.cmpi eq, %arg1, %c0_i32_20 : i32
    %28 = arith.extui %27 : i1 to i32
    %c0_i32_21 = arith.constant 0 : i32
    %29 = arith.cmpi ne, %28, %c0_i32_21 : i32
    scf.if %29 {
      %c0_22 = arith.constant 0 : index
      %c0_23 = arith.constant 0 : index
      %c0_24 = arith.constant 0 : index
      %30 = vector.load %arg8[%c0_22, %c0_23, %c0_24] : memref<1x32x1xf32, #tpu.memory_space<vmem>>, vector<1x32x1xf32>
      %c0_25 = arith.constant 0 : index
      %c0_26 = arith.constant 0 : index
      %c0_27 = arith.constant 0 : index
      %31 = vector.load %arg7[%c0_25, %c0_26, %c0_27] : memref<1x32x1xf32, #tpu.memory_space<vmem>>, vector<1x32x1xf32>
      tpu.vector_store %arg7[%c0_25, %c0_26, %c0_27], %30 {strides = array<i32>} : memref<1x32x1xf32, #tpu.memory_space<vmem>>, vector<1x32x1xf32>,
    } else {
    }
    return
  }
  func.func @transform_0(%arg0: i32, %arg1: i32) -> (i32, i32, i32) {
    %c0_i32 = arith.constant 0 : i32
    %c0_i32_0 = arith.constant 0 : i32
    return %arg0, %c0_i32, %arg1 : i32, i32, i32
  }
  func.func @transform_1(%arg0: i32, %arg1: i32) -> (i32, i32) {
    %c0_i32 = arith.constant 0 : i32
    %c0_i32_0 = arith.constant 0 : i32
    %c0_i32_1 = arith.constant 0 : i32
    return %c0_i32, %c0_i32_0 : i32, i32
  }
  func.func @transform_2(%arg0: i32, %arg1: i32) -> (i32, i32) {
    %c0_i32 = arith.constant 0 : i32
    %c0_i32_0 = arith.constant 0 : i32
    %c0_i32_1 = arith.constant 0 : i32
    return %c0_i32, %c0_i32_0 : i32, i32
  }
  func.func @transform_3(%arg0: i32, %arg1: i32) -> (i32, i32) {
    %c0_i32 = arith.constant 0 : i32
    %c0_i32_0 = arith.constant 0 : i32
    %c0_i32_1 = arith.constant 0 : i32
    return %c0_i32, %c0_i32_0 : i32, i32
  }
  func.func @transform_4(%arg0: i32, %arg1: i32) -> (i32, i32) {
    %c0_i32 = arith.constant 0 : i32
    %c0_i32_0 = arith.constant 0 : i32
    %c0_i32_1 = arith.constant 0 : i32
    return %c0_i32, %c0_i32_0 : i32, i32
  }
  func.func @transform_5(%arg0: i32, %arg1: i32) -> (i32, i32, i32) {
    %c0_i32 = arith.constant 0 : i32
    %c0_i32_0 = arith.constant 0 : i32
    %c0_i32_1 = arith.constant 0 : i32
    return %arg0, %c0_i32, %c0_i32_0 : i32, i32, i32
  }
}

</mosaic_0001>

<llo_original>
// kernel: tpu_custom_call.1
$region0: #{tpu_custom_call.1}
  #allocation0 [shape = 'u32[]', space=smem, size = 0x4, offset = 0x4, fixed_abs, tag = 'smem constant byte address 0x4 - core index']
  #allocation1 [shape = 'u32[144,128]{1,0:T(1,128)}', space=vmem, size = 0x12000, scoped, tag = 'internal scratch']
  #allocation2 [shape = 'f32[1,32,1]{2,1,0:T(8,128)}', space=vmem, size = 0x4000, scoped, tag = 'scratch operand']
  %s0 = inlined_call_operand.vmem [shape: f32[2,4,16], index: 0, kind: input, shape index: {}]
  %s1 = inlined_call_operand.vmem [shape: bf16[32,4], index: 1, kind: input, shape index: {}]
  %s2 = inlined_call_operand.vmem [shape: f32[32,1], index: 2, kind: input, shape index: {}]
  %s3 = inlined_call_operand.vmem [shape: bf16[32,32], index: 3, kind: input, shape index: {}]
  %s4 = inlined_call_operand.vmem [shape: f32[32,1], index: 4, kind: input, shape index: {}]
  %s5 = inlined_call_operand.vmem [shape: f32[2,32,1], index: 5, kind: output, shape index: {}]
  %s6 = sld [smem:[#allocation0]]
  $region61: #{tpu_custom_call.1} parent=0
    _
  %s8 = ssub.s32 1, %s6
  %s9 = scalar_select 0, %s8, %s6
  loop: start=0, step=1, limit=4
  $region2: #{tpu_custom_call.1} parent=0 // loop_pre_header
    _
  $region3: #{tpu_custom_call.1} parent=0 // loop_header
    %s11 = sphi 0, %s15
    %p12 = scmp.ge.s32.totalorder %s11, 4
    %s18 = sphi 0, %s30
    %s19 = sphi 0, %s26
    %s20 = sphi 0, %s18
    %s21 = sphi 0, %s19
    %s22 = sphi 0, %s20
    %s23 = sphi 0, %s21
    %s35 = sphi 0, %s37
    %s38 = sphi 0, %s35
    %s39 = sphi 0, %s38
    %s55 = sphi 0, %s39
    %s59 = sphi 0, %s59
    %s61 = sphi 0, %s59
    %s62 = sphi 0, %s61
    %s76 = sphi 0, %s62
    %s80 = sphi 0, %s80
    %s82 = sphi 0, %s80
    %s83 = sphi 0, %s82
    %s97 = sphi 0, %s83
    %s101 = sphi 0, %s101
    %s103 = sphi 0, %s101
    %s104 = sphi 0, %s103
    %s118 = sphi 0, %s104
    %s122 = sphi 0, %s122
    %s124 = sphi 0, %s122
    %s125 = sphi 0, %s124
    %s139 = sphi 0, %s125
    %s145 = sphi 0, %s147
    %s148 = sphi 0, %s145
    %s149 = sphi 0, %s148
    %s165 = sphi 0, %s149
  $region4: #{tpu_custom_call.1} parent=0 // loop_header_branch
    %14 = sbr.rel (%p12) target = $region8
  $region5: #{tpu_custom_call.1} parent=0 // loop_body
    %s16 = ssub.s32 %s11, 1
    %s17 = ssub.s32 %s11, 2
    %s24 = sadd.s32 1, %s19
    %p25 = scmp.ge.s32.totalorder %s24, 1
    %s26 = scalar_select %p25, 0, %s24
    %s27 = sadd.s32 1, %s18
    %s28 = scalar_select %p25, %s27, %s18
    %p29 = scmp.ge.s32.totalorder %s28, 2
    %s30 = scalar_select %p29, 0, %s28
    %s31 = ssub.s32 %s18, %s30
    %s32 = ssub.s32 %s19, %s26
    %s33 = sor.u32 %s31, %s32
    %p34 = scmp.eq.s32.totalorder %s33, 0
    %s36 = sadd.s32 %s35, 1
    %s37 = scalar_select %p34, %s35, %s36
    %p40 = pneg %p34
    %p41 = scmp.eq.s32.totalorder %s11, 1
    %p42 = por %p40, %p41
    %p43 = scmp.ne.s32.totalorder %s35, %s38
    %p44 = scmp.eq.s32.totalorder %s11, 0
    %p45 = por %p43, %p44
    %p46 = scmp.ne.s32.totalorder %s35, %s38
    %p47 = scmp.eq.s32.totalorder %s16, 1
    %p48 = por %p46, %p47
    %p49 = scmp.ne.s32.totalorder %s38, %s39
    %p50 = scmp.eq.s32.totalorder %s16, 0
    %p51 = por %p49, %p50
    %p52 = scmp.ne.s32.totalorder %s38, %s39
    %p53 = scmp.eq.s32.totalorder %s17, 1
    %p54 = por %p52, %p53
    %p56 = scmp.ne.s32.totalorder %s39, %s55
    %p57 = scmp.eq.s32.totalorder %s17, 0
    %p58 = por %p56, %p57
    %s60 = sadd.s32 %s59, 1
    %p63 = scmp.eq.s32.totalorder %s11, 1
    %p64 = scmp.ne.s32.totalorder %s59, %s61
    %p65 = scmp.eq.s32.totalorder %s11, 0
    %p66 = por %p64, %p65
    %p67 = scmp.ne.s32.totalorder %s59, %s61
    %p68 = scmp.eq.s32.totalorder %s16, 1
    %p69 = por %p67, %p68
    %p70 = scmp.ne.s32.totalorder %s61, %s62
    %p71 = scmp.eq.s32.totalorder %s16, 0
    %p72 = por %p70, %p71
    %p73 = scmp.ne.s32.totalorder %s61, %s62
    %p74 = scmp.eq.s32.totalorder %s17, 1
    %p75 = por %p73, %p74
    %p77 = scmp.ne.s32.totalorder %s62, %s76
    %p78 = scmp.eq.s32.totalorder %s17, 0
    %p79 = por %p77, %p78
    %s81 = sadd.s32 %s80, 1
    %p84 = scmp.eq.s32.totalorder %s11, 1
    %p85 = scmp.ne.s32.totalorder %s80, %s82
    %p86 = scmp.eq.s32.totalorder %s11, 0
    %p87 = por %p85, %p86
    %p88 = scmp.ne.s32.totalorder %s80, %s82
    %p89 = scmp.eq.s32.totalorder %s16, 1
    %p90 = por %p88, %p89
    %p91 = scmp.ne.s32.totalorder %s82, %s83
    %p92 = scmp.eq.s32.totalorder %s16, 0
    %p93 = por %p91, %p92
    %p94 = scmp.ne.s32.totalorder %s82, %s83
    %p95 = scmp.eq.s32.totalorder %s17, 1
    %p96 = por %p94, %p95
    %p98 = scmp.ne.s32.totalorder %s83, %s97
    %p99 = scmp.eq.s32.totalorder %s17, 0
    %p100 = por %p98, %p99
    %s102 = sadd.s32 %s101, 1
    %p105 = scmp.eq.s32.totalorder %s11, 1
    %p106 = scmp.ne.s32.totalorder %s101, %s103
    %p107 = scmp.eq.s32.totalorder %s11, 0
    %p108 = por %p106, %p107
    %p109 = scmp.ne.s32.totalorder %s101, %s103
    %p110 = scmp.eq.s32.totalorder %s16, 1
    %p111 = por %p109, %p110
    %p112 = scmp.ne.s32.totalorder %s103, %s104
    %p113 = scmp.eq.s32.totalorder %s16, 0
    %p114 = por %p112, %p113
    %p115 = scmp.ne.s32.totalorder %s103, %s104
    %p116 = scmp.eq.s32.totalorder %s17, 1
    %p117 = por %p115, %p116
    %p119 = scmp.ne.s32.totalorder %s104, %s118
    %p120 = scmp.eq.s32.totalorder %s17, 0
    %p121 = por %p119, %p120
    %s123 = sadd.s32 %s122, 1
    %p126 = scmp.eq.s32.totalorder %s11, 1
    %p127 = scmp.ne.s32.totalorder %s122, %s124
    %p128 = scmp.eq.s32.totalorder %s11, 0
    %p129 = por %p127, %p128
    %p130 = scmp.ne.s32.totalorder %s122, %s124
    %p131 = scmp.eq.s32.totalorder %s16, 1
    %p132 = por %p130, %p131
    %p133 = scmp.ne.s32.totalorder %s124, %s125
    %p134 = scmp.eq.s32.totalorder %s16, 0
    %p135 = por %p133, %p134
    %p136 = scmp.ne.s32.totalorder %s124, %s125
    %p137 = scmp.eq.s32.totalorder %s17, 1
    %p138 = por %p136, %p137
    %p140 = scmp.ne.s32.totalorder %s125, %s139
    %p141 = scmp.eq.s32.totalorder %s17, 0
    %p142 = por %p140, %p141
    %s143 = ssub.s32 %s18, %s30
    %p144 = scmp.eq.s32.totalorder %s143, 0
    %s146 = sadd.s32 %s145, 1
    %s147 = scalar_select %p144, %s145, %s146
    %p150 = pneg %p144
    %p151 = scmp.eq.s32.totalorder %s11, 1
    %p152 = por %p150, %p151
    %p153 = scmp.ne.s32.totalorder %s145, %s148
    %p154 = scmp.eq.s32.totalorder %s11, 0
    %p155 = por %p153, %p154
    %p156 = scmp.ne.s32.totalorder %s145, %s148
    %p157 = scmp.eq.s32.totalorder %s16, 1
    %p158 = por %p156, %p157
    %p159 = scmp.ne.s32.totalorder %s148, %s149
    %p160 = scmp.eq.s32.totalorder %s16, 0
    %p161 = por %p159, %p160
    %p162 = scmp.ne.s32.totalorder %s148, %s149
    %p163 = scmp.eq.s32.totalorder %s17, 1
    %p164 = por %p162, %p163
    %p166 = scmp.ne.s32.totalorder %s149, %s165
    %p167 = scmp.eq.s32.totalorder %s17, 0
    %p168 = por %p166, %p167
    %p169 = scmp.le.s32.totalorder 1, %s11
    %p170 = scmp.lt.s32.totalorder %s11, 3
    %p171 = pnand %p169, %p170
    %p172 = pneg %p171
    // Predicated region
    $region9: #{tpu_custom_call.1} parent=5 // pred_check
      _
    $region10: #{tpu_custom_call.1} parent=5 // pred_check_branch
      %174 = sbr.rel (%p171) target = $region12
    $region11: #{tpu_custom_call.1} parent=5 // pred_region
      %s175 = ssub.s32 %s11, 1
      // Predicated region
      $region13: #{tpu_custom_call.1} parent=11 // pred_check
        %p176 = pneg %p72
      $region14: #{tpu_custom_call.1} parent=11 // pred_check_branch
        %178 = sbr.rel (%p176) target = $region16
      $region15: #{tpu_custom_call.1} parent=11 // pred_region
        _
      $region16: #{tpu_custom_call.1} parent=11 // pred_fallthru
        _
      // Predicated region
      $region17: #{tpu_custom_call.1} parent=11 // pred_check
        %p179 = pneg %p93
      $region18: #{tpu_custom_call.1} parent=11 // pred_check_branch
        %181 = sbr.rel (%p179) target = $region20
      $region19: #{tpu_custom_call.1} parent=11 // pred_region
        _
      $region20: #{tpu_custom_call.1} parent=11 // pred_fallthru
        _
      // Predicated region
      $region21: #{tpu_custom_call.1} parent=11 // pred_check
        %p182 = pneg %p114
      $region22: #{tpu_custom_call.1} parent=11 // pred_check_branch
        %184 = sbr.rel (%p182) target = $region24
      $region23: #{tpu_custom_call.1} parent=11 // pred_region
        _
      $region24: #{tpu_custom_call.1} parent=11 // pred_fallthru
        _
      // Predicated region
      $region25: #{tpu_custom_call.1} parent=11 // pred_check
        %p185 = pneg %p135
      $region26: #{tpu_custom_call.1} parent=11 // pred_check_branch
        %187 = sbr.rel (%p185) target = $region28
      $region27: #{tpu_custom_call.1} parent=11 // pred_region
        _
      $region28: #{tpu_custom_call.1} parent=11 // pred_fallthru
        _
    $region12: #{tpu_custom_call.1} parent=5 // pred_fallthru
      _
    %p188 = scmp.lt.s32.totalorder %s11, 2
    // Predicated region
    $region29: #{tpu_custom_call.1} parent=5 // pred_check
      %p189 = pneg %p188
    $region30: #{tpu_custom_call.1} parent=5 // pred_check_branch
      %191 = sbr.rel (%p189) target = $region32
    $region31: #{tpu_custom_call.1} parent=5 // pred_region
      // Predicated region
      $region33: #{tpu_custom_call.1} parent=31 // pred_check
        %p192 = pneg %p45
      $region34: #{tpu_custom_call.1} parent=31 // pred_check_branch
        %194 = sbr.rel (%p192) target = $region36
      $region35: #{tpu_custom_call.1} parent=31 // pred_region
        %p195 = scmp.lt.s32.totalorder %s18, 1
        %s196 = scalar_select %p195, %s18, 1
        %p197 = scmp.lt.s32.totalorder %s19, 0
        %s198 = scalar_select %p197, %s19, 0
        %s199 = sadd.s32 %s198, %s196
        %s200 = smul.addr %s199, 4
        %s201 = scalar_lea.vmem %s0, %s200
      $region36: #{tpu_custom_call.1} parent=31 // pred_fallthru
        _
    $region32: #{tpu_custom_call.1} parent=5 // pred_fallthru
      _
    %p202 = scmp.le.s32.totalorder 1, %s11
    %p203 = scmp.lt.s32.totalorder %s11, 3
    %p204 = pnand %p202, %p203
    %p205 = pneg %p204
    // Predicated region
    $region37: #{tpu_custom_call.1} parent=5 // pred_check
      _
    $region38: #{tpu_custom_call.1} parent=5 // pred_check_branch
      %207 = sbr.rel (%p204) target = $region40
    $region39: #{tpu_custom_call.1} parent=5 // pred_region
      %s208 = ssub.s32 %s11, 1
      %p209 = scmp.lt.s32.totalorder %s20, 1
      %s210 = scalar_select %p209, %s20, 1
      %p211 = scmp.lt.s32.totalorder %s21, 0
      %s212 = scalar_select %p211, %s21, 0
      %s213 = sadd.s32 %s212, %s210
      %s214 = smul.addr %s213, 4
      %s215 = scalar_lea.vmem %s0, %s214
      %p216 = pneg %p51
      %p217 = pneg %p48
      %p218 = pneg %p72
      %p219 = pneg %p69
      %p220 = pneg %p93
      %p221 = pneg %p90
      %p222 = pneg %p114
      %p223 = pneg %p111
      %p224 = pneg %p135
      %p225 = pneg %p132
      %p226 = pneg %p161
      %p227 = pneg %p158
      %p228 = scmp.lt.s32.totalorder %s20, 1
      %s229 = scalar_select %p228, %s20, 1
      %s230 = smul.addr %s229, 4
      %s231 = smul.addr %s230, 8
      %s232 = scalar_lea.vmem %s5, %s231
      %p233 = scmp.lt.s32.totalorder %s20, 1
      %s234 = scalar_select %p233, %s20, 1
      %p235 = scmp.lt.s32.totalorder %s21, 0
      %s236 = scalar_select %p235, %s21, 0
      %s237 = sadd.s32 %s236, %s234
      %s238 = smul.addr %s237, 4
      %s239 = scalar_lea.vmem %s0, %s238
      %p240 = scmp.lt.s32.totalorder %s20, 1
      %s241 = scalar_select %p240, %s20, 1
      %s242 = smul.addr %s241, 4
      %s243 = smul.addr %s242, 8
      %s244 = scalar_lea.vmem %s5, %s243
      %p246 = scmp.eq.s32.totalorder %s21, 0
      // Predicated region
      $region41: #{tpu_custom_call.1} parent=39 // pred_check
        %p247 = pneg %p246
      $region42: #{tpu_custom_call.1} parent=39 // pred_check_branch
        %249 = sbr.rel (%p247) target = $region44
      $region43: #{tpu_custom_call.1} parent=39 // pred_region
        %vm250 = vcmask 7168
        %251 = vst.msk [vmem:[#allocation2] sm:$0xff] %vm250, -inf
        %252 = vst.msk [vmem:[#allocation2 + $0x8] sm:$0xff] %vm250, -inf
        %253 = vst.msk [vmem:[#allocation2 + $0x10] sm:$0xff] %vm250, -inf
        %254 = vst.msk [vmem:[#allocation2 + $0x18] sm:$0xff] %vm250, -inf
      $region44: #{tpu_custom_call.1} parent=39 // pred_fallthru
        _
      %v255 = vld [vmem:[%s1] sm:$0xf]
      %v256 = vld [vmem:[%s1 + $0x4] sm:$0xf]
      %v257 = vld [vmem:[%s1 + $0x8] sm:$0xf]
      %v258 = vld [vmem:[%s1 + $0xc] sm:$0xf]
      %v259 = vld [vmem:[%s3] sm:$0xf]
      %v260 = vld [vmem:[%s3 + $0x4] sm:$0xf]
      %v261 = vld [vmem:[%s3 + $0x8] sm:$0xf]
      %v262 = vld [vmem:[%s3 + $0xc] sm:$0xf]
      %v263 = vld [vmem:[%s2] sm:$0xff]
      %v264 = vld [vmem:[%s2 + $0x8] sm:$0xff]
      %v265 = vld [vmem:[%s2 + $0x10] sm:$0xff]
      %v266 = vld [vmem:[%s2 + $0x18] sm:$0xff]
      %v267 = vld [vmem:[%s4] sm:$0xff]
      %v268 = vld [vmem:[%s4 + $0x8] sm:$0xff]
      %v269 = vld [vmem:[%s4 + $0x10] sm:$0xff]
      %v270 = vld [vmem:[%s4 + $0x18] sm:$0xff]
      %v271 = vld [vmem:[%s239] sm:$0xf]
      %v272 = vpack.c.bf16 %v271, %v271
      %274 = vset.pattern.permute.xlu0 0
      %275 = vperm.xlu0 %274, %v263
      %v276 = vpop.permute.xlu0 %275
      %279 = vset.pattern.permute.xlu0 0
      %280 = vperm.xlu0 %279, %v264
      %v281 = vpop.permute.xlu0 %280
      %284 = vset.pattern.permute.xlu0 0
      %285 = vperm.xlu0 %284, %v265
      %v286 = vpop.permute.xlu0 %285
      %289 = vset.pattern.permute.xlu0 0
      %290 = vperm.xlu0 %289, %v266
      %v291 = vpop.permute.xlu0 %290
      %v297 = vunpack.c.l.b16 %v255
      %v298 = vunpack.c.l.b16 %v256
      %v299 = vunpack.c.l.b16 %v257
      %v300 = vunpack.c.l.b16 %v258
      %v301 = vpack.c.b16 %v298, %v297
      %v302 = vpack.c.b16 %v300, %v299
      %vm303 = vcmask 31744
      %v305 = vsel %vm303, %v301, 0
      %v308 = vsel %vm303, %v302, 0
      %vm310 = vcmask 1041408
      %v312 = vsel %vm310, %v272, 0
      %314 = vmatprep.subr.bf16.mxu0 0
      %315 = vmatpush1.bf16.msra.mxu0 %v312
      %316 = vmatprep.subr.bf16.mxu0 0
      %317 = vmatpush1.bf16.msra.mxu0 0
      %318 = vmatprep.subr.bf16.mxu0 0
      %319 = vmatpush1.bf16.msra.mxu0 0
      %320 = vmatprep.subr.bf16.mxu0 0
      %321 = vmatpush1.bf16.msra.mxu0 0
      %322 = vmatprep.subr.bf16.mxu0 0
      %323 = vmatpush1.bf16.msra.mxu0 0
      %324 = vmatprep.subr.bf16.mxu0 0
      %325 = vmatpush1.bf16.msra.mxu0 0
      %326 = vmatprep.subr.bf16.mxu0 0
      %327 = vmatpush1.bf16.msra.mxu0 0
      %328 = vmatprep.subr.bf16.mxu0 0
      %329 = vmatpush1.bf16.msra.mxu0 0
      %330 = vmatprep.subr.bf16.mxu0 0
      %331 = vmatpush1.bf16.msra.mxu0 0
      %332 = vmatprep.subr.bf16.mxu0 0
      %333 = vmatpush1.bf16.msra.mxu0 0
      %334 = vmatprep.subr.bf16.mxu0 0
      %335 = vmatpush1.bf16.msra.mxu0 0
      %336 = vmatprep.subr.bf16.mxu0 0
      %337 = vmatpush1.bf16.msra.mxu0 0
      %338 = vmatprep.subr.bf16.mxu0 0
      %339 = vmatpush1.bf16.msra.mxu0 0
      %340 = vmatprep.subr.bf16.mxu0 0
      %341 = vmatpush1.bf16.msra.mxu0 0
      %342 = vmatprep.subr.bf16.mxu0 0
      %343 = vmatpush1.bf16.msra.mxu0 0
      %344 = vmatprep.subr.bf16.mxu0 0
      %345 = vmatpush1.bf16.msra.mxu0 0
      %346 = vmatprep.mubr.bf16.mxu0 0
      %347 = vmatmul.mubr.bf16.gmra.mrb[0].mxu0 %v305
      %v348 = vpop.f32.mrb[0].mxu0
      %v349 = vadd.f32 %v276, %v348
      %v350 = vpop.f32.mrb[0].mxu0
      %v351 = vpop.f32.mrb[0].mxu0
      %v352 = vadd.f32 %v281, %v351
      %v353 = vpop.f32.mrb[0].mxu0
      %354 = vmatprep.mubr.bf16.mxu0 0
      %355 = vmatmul.mubr.bf16.gmra.mrb[0].mxu0 %v308
      %v356 = vpop.f32.mrb[0].mxu0
      %v357 = vadd.f32 %v286, %v356
      %v358 = vpop.f32.mrb[0].mxu0
      %v359 = vpop.f32.mrb[0].mxu0
      %v360 = vadd.f32 %v291, %v359
      %v361 = vpop.f32.mrb[0].mxu0
      %362 = vdwg.mxu0
      %v363 = vmax.f32 %v349, 0.0
      %v364 = vmax.f32 %v352, 0.0
      %v365 = vmax.f32 %v357, 0.0
      %v366 = vmax.f32 %v360, 0.0
      %v367 = vpack.c.bf16 %v364, %v363
      %v368 = vpack.c.bf16 %v366, %v365
      %370 = vset.pattern.permute.xlu0 0
      %371 = vperm.xlu0 %370, %v267
      %v372 = vpop.permute.xlu0 %371
      %375 = vset.pattern.permute.xlu0 0
      %376 = vperm.xlu0 %375, %v268
      %v377 = vpop.permute.xlu0 %376
      %380 = vset.pattern.permute.xlu0 0
      %381 = vperm.xlu0 %380, %v269
      %v382 = vpop.permute.xlu0 %381
      %385 = vset.pattern.permute.xlu0 0
      %386 = vperm.xlu0 %385, %v270
      %v387 = vpop.permute.xlu0 %386
      %v393 = vunpack.c.l.b16 %v259
      %v394 = vunpack.c.l.b16 %v260
      %v395 = vunpack.c.l.b16 %v261
      %v396 = vunpack.c.l.b16 %v262
      %v397 = vpack.c.b16 %v394, %v393
      %v398 = vpack.c.b16 %v396, %v395
      %vm399 = vcmask 261120
      %v401 = vsel %vm399, %v397, 0
      %v404 = vsel %vm399, %v398, 0
      %406 = vmatprep.subr.bf16.mxu0 0
      %407 = vmatpush1.bf16.msra.mxu0 %v367
      %408 = vmatprep.subr.bf16.mxu0 0
      %409 = vmatpush1.bf16.msra.mxu0 %v368
      %410 = vmatprep.subr.bf16.mxu0 0
      %411 = vmatpush1.bf16.msra.mxu0 0
      %412 = vmatprep.subr.bf16.mxu0 0
      %413 = vmatpush1.bf16.msra.mxu0 0
      %414 = vmatprep.subr.bf16.mxu0 0
      %415 = vmatpush1.bf16.msra.mxu0 0
      %416 = vmatprep.subr.bf16.mxu0 0
      %417 = vmatpush1.bf16.msra.mxu0 0
      %418 = vmatprep.subr.bf16.mxu0 0
      %419 = vmatpush1.bf16.msra.mxu0 0
      %420 = vmatprep.subr.bf16.mxu0 0
      %421 = vmatpush1.bf16.msra.mxu0 0
      %422 = vmatprep.subr.bf16.mxu0 0
      %423 = vmatpush1.bf16.msra.mxu0 0
      %424 = vmatprep.subr.bf16.mxu0 0
      %425 = vmatpush1.bf16.msra.mxu0 0
      %426 = vmatprep.subr.bf16.mxu0 0
      %427 = vmatpush1.bf16.msra.mxu0 0
      %428 = vmatprep.subr.bf16.mxu0 0
      %429 = vmatpush1.bf16.msra.mxu0 0
      %430 = vmatprep.subr.bf16.mxu0 0
      %431 = vmatpush1.bf16.msra.mxu0 0
      %432 = vmatprep.subr.bf16.mxu0 0
      %433 = vmatpush1.bf16.msra.mxu0 0
      %434 = vmatprep.subr.bf16.mxu0 0
      %435 = vmatpush1.bf16.msra.mxu0 0
      %436 = vmatprep.subr.bf16.mxu0 0
      %437 = vmatpush1.bf16.msra.mxu0 0
      %438 = vmatprep.mubr.bf16.mxu0 0
      %439 = vmatmul.mubr.bf16.gmra.mrb[0].mxu0 %v401
      %v440 = vpop.f32.mrb[0].mxu0
      %v441 = vadd.f32 %v372, %v440
      %v442 = vpop.f32.mrb[0].mxu0
      %v443 = vpop.f32.mrb[0].mxu0
      %v444 = vadd.f32 %v377, %v443
      %v445 = vpop.f32.mrb[0].mxu0
      %446 = vmatprep.mubr.bf16.mxu0 0
      %447 = vmatmul.mubr.bf16.gmra.mrb[0].mxu0 %v404
      %v448 = vpop.f32.mrb[0].mxu0
      %v449 = vadd.f32 %v382, %v448
      %v450 = vpop.f32.mrb[0].mxu0
      %v451 = vpop.f32.mrb[0].mxu0
      %v452 = vadd.f32 %v387, %v451
      %v453 = vpop.f32.mrb[0].mxu0
      %454 = vdwg.mxu0
      %vm455 = vcmask 130048
      %v456 = vsel %vm455, %v441, -inf
      %457 = vmax.xlane.f32.xlu0 %v456
      %v458 = vpop.xlane.xlu0 %457
      %v459 = vsel %vm455, %v444, -inf
      %460 = vmax.xlane.f32.xlu0 %v459
      %v461 = vpop.xlane.xlu0 %460
      %v462 = vsel %vm455, %v449, -inf
      %463 = vmax.xlane.f32.xlu0 %v462
      %v464 = vpop.xlane.xlu0 %463
      %v465 = vsel %vm455, %v452, -inf
      %466 = vmax.xlane.f32.xlu0 %v465
      %v467 = vpop.xlane.xlu0 %466
      %v468 = vld [vmem:[#allocation2] sm:$0xff]
      %v469 = vld [vmem:[#allocation2 + $0x8] sm:$0xff]
      %v470 = vld [vmem:[#allocation2 + $0x10] sm:$0xff]
      %v471 = vld [vmem:[#allocation2 + $0x18] sm:$0xff]
      %v472 = vmax.f32 %v468, %v458
      %v473 = vmax.f32 %v469, %v461
      %v474 = vmax.f32 %v470, %v464
      %v475 = vmax.f32 %v471, %v467
      %vm476 = vcmask 7168
      %477 = vst.msk [vmem:[#allocation2] sm:$0xff] %vm476, %v472
      %478 = vst.msk [vmem:[#allocation2 + $0x8] sm:$0xff] %vm476, %v473
      %479 = vst.msk [vmem:[#allocation2 + $0x10] sm:$0xff] %vm476, %v474
      %480 = vst.msk [vmem:[#allocation2 + $0x18] sm:$0xff] %vm476, %v475
      // Predicated region
      $region45: #{tpu_custom_call.1} parent=39 // pred_check
        %p481 = pneg %p246
      $region46: #{tpu_custom_call.1} parent=39 // pred_check_branch
        %483 = sbr.rel (%p481) target = $region48
      $region47: #{tpu_custom_call.1} parent=39 // pred_region
        %v484 = vld [vmem:[#allocation2] sm:$0xff]
        %v485 = vld [vmem:[#allocation2 + $0x8] sm:$0xff]
        %v486 = vld [vmem:[#allocation2 + $0x10] sm:$0xff]
        %v487 = vld [vmem:[#allocation2 + $0x18] sm:$0xff]
        %488 = vst.msk [vmem:[%s244] sm:$0xff] %vm476, %v484
        %489 = vst.msk [vmem:[%s244 + $0x8] sm:$0xff] %vm476, %v485
        %490 = vst.msk [vmem:[%s244 + $0x10] sm:$0xff] %vm476, %v486
        %491 = vst.msk [vmem:[%s244 + $0x18] sm:$0xff] %vm476, %v487
      $region48: #{tpu_custom_call.1} parent=39 // pred_fallthru
        _
      %p492 = scmp.lt.s32.totalorder %s20, 1
      %s493 = scalar_select %p492, %s20, 1
      %s494 = smul.addr %s493, 4
      %s495 = smul.addr %s494, 8
      %s496 = scalar_lea.vmem %s5, %s495
      // Predicated region
      $region49: #{tpu_custom_call.1} parent=39 // pred_check
        %p497 = pneg %p158
      $region50: #{tpu_custom_call.1} parent=39 // pred_check_branch
        %499 = sbr.rel (%p497) target = $region52
      $region51: #{tpu_custom_call.1} parent=39 // pred_region
        _
      $region52: #{tpu_custom_call.1} parent=39 // pred_fallthru
        _
    $region40: #{tpu_custom_call.1} parent=5 // pred_fallthru
      _
    %p500 = scmp.le.s32.totalorder 2, %s11
    // Predicated region
    $region53: #{tpu_custom_call.1} parent=5 // pred_check
      %p501 = pneg %p500
    $region54: #{tpu_custom_call.1} parent=5 // pred_check_branch
      %503 = sbr.rel (%p501) target = $region56
    $region55: #{tpu_custom_call.1} parent=5 // pred_region
      %s504 = ssub.s32 %s11, 2
      // Predicated region
      $region57: #{tpu_custom_call.1} parent=55 // pred_check
        %p505 = pneg %p164
      $region58: #{tpu_custom_call.1} parent=55 // pred_check_branch
        %507 = sbr.rel (%p505) target = $region60
      $region59: #{tpu_custom_call.1} parent=55 // pred_region
        %p508 = scmp.lt.s32.totalorder %s22, 1
        %s509 = scalar_select %p508, %s22, 1
        %s510 = smul.addr %s509, 4
        %s511 = smul.addr %s510, 8
        %s512 = scalar_lea.vmem %s5, %s511
      $region60: #{tpu_custom_call.1} parent=55 // pred_fallthru
        _
    $region56: #{tpu_custom_call.1} parent=5 // pred_fallthru
      _
  $region6: #{tpu_custom_call.1} parent=0 // loop_footer
    %s15 = sadd.s32 1, %s11
  $region7: #{tpu_custom_call.1} parent=0 // loop_footer_branch
    %10 = sbr.rel target = $region3
  $region8: #{tpu_custom_call.1} parent=0 // loop_exit
    _

</llo_original>
